<compile_context>
chip_gen: v7x
topology: tpu7x:2x2x1
jax: 0.10.0
libtpu: 0.0.40
codegen_flags: <defaults>
</compile_context>

<pallas_src>
import jax
import jax.numpy as jnp
from jax import lax
from jax.experimental import pallas as pl
from jax.experimental.pallas import tpu as pltpu


def cross_attention_kernel(xq_ref, xv_ref, y_ref,
                           wq_ref, wk_ref, wv_ref, wp_ref, bp_ref,
                           o_ref, k_scr, v_scr):
    qi = pl.program_id(1)
    in_dtype = xq_ref.dtype

    @pl.when(qi == 0)
    def _():
        # K / V projections for this batch element: computed once, cached in
        # persistent VMEM scratch, reused by every query tile of this batch.
        k_scr[...] = jnp.dot(y_ref[0], wk_ref[...],
                             preferred_element_type=jnp.float32).astype(in_dtype)
        v_scr[...] = jnp.dot(xv_ref[0], wv_ref[...],
                             preferred_element_type=jnp.float32).astype(in_dtype)

    # Q for this query tile (softmax scale already folded into Wq on the host).
    q = jnp.dot(xq_ref[0], wq_ref[...],
                preferred_element_type=jnp.float32).astype(in_dtype)

    # Scores (tq, M): contract the feature axis of K directly -> no explicit k.T.
    s = lax.dot_general(q, k_scr[...], (((1,), (1,)), ((), ())),
                        preferred_element_type=jnp.float32)

    # Softmax in f32 (exp runs on the EUP).
    m = jnp.max(s, axis=-1, keepdims=True)
    e = jnp.exp(s - m)
    l = jnp.sum(e, axis=-1, keepdims=True)

    # Hard threshold attn < 0.6 -> 0, tested as e < 0.6*l so the mask does not
    # depend on any reciprocal rounding.
    e = jnp.where(e < 0.6 * l, 0.0, e)
    # l is only (tq, 1); an approx (EUP) reciprocal saves ~nothing here, so keep
    # the exact one to stay bit-tight vs. the f32 reference near the threshold.
    p = e * pl.reciprocal(l, approx=False)

    # attn @ V in the input dtype (bf16 MXU path in production), f32 accumulate.
    ctx = jnp.dot(p.astype(in_dtype), v_scr[...],
                  preferred_element_type=jnp.float32)

    # Output projection + bias (f32 accumulate, cast on store).
    out = jnp.dot(ctx.astype(in_dtype), wp_ref[...],
                  preferred_element_type=jnp.float32) + bp_ref[...]
    o_ref[0] = out.astype(o_ref.dtype)


def _pick_query_tile(n):
    # Prefer large, 128/256-aligned query tiles (fills the v6e/v7x MXU); fall
    # back to the full sequence for small/odd N (block == full dim is legal).
    for t in (512, 256, 128, 64, 32, 16, 8):
        if n >= t and n % t == 0:
            return t
    return n


def cross_attention(x, y, params, *, num_heads=8):
    B, N, D = x.shape
    By, M, Dy = y.shape
    assert By == B and Dy == D
    assert D % num_heads == 0, "dim should be divisible by num_heads"
    # v = Wv(x) has N rows while attn has M columns, so the module itself only
    # works when x and y share a sequence length (same as the PyTorch forward).
    assert M == N, "Cross_Attention requires x and y to have the same seq length"
    scale = (D // num_heads) ** -0.5

    in_dtype = x.dtype
    # nn.Linear computes x @ W^T: pre-transpose once on the host, keep weights
    # in the input dtype (bf16-friendly), and fold the softmax scale into Wq.
    wq_t = (params["wq"] * scale).T.astype(in_dtype)
    wk_t = params["wk"].T.astype(in_dtype)
    wv_t = params["wv"].T.astype(in_dtype)
    wp_t = params["wp"].T.astype(in_dtype)
    bp = params["bp"].reshape(1, D).astype(jnp.float32)

    tq = _pick_query_tile(N)
    grid = (B, N // tq)

    # Rough VMEM budget: double-buffered blocks + persistent K/V scratch +
    # f32 score-tile temporaries.  Only raise the scoped limit when the default
    # (16/32 MiB) would be too small; cap below v7x's 64 MiB physical VMEM.
    itemsize = jnp.dtype(in_dtype).itemsize
    est = (2 * (2 * tq * D + N * D + M * D) * itemsize   # x tile, out, full x, full y (x2 buffers)
           + 2 * 4 * D * D * itemsize + 2 * D * 4        # 4 weights (x2 buffers) + bias
           + (N * D + M * D) * itemsize                  # K/V scratch
           + 3 * tq * M * 4)                             # score/exp f32 temporaries
    compiler_kwargs = dict(dimension_semantics=("parallel", "arbitrary"))
    if est > 16 * 1024 * 1024:
        compiler_kwargs["vmem_limit_bytes"] = min(int(est * 1.25), 64 * 1024 * 1024)

    return pl.pallas_call(
        cross_attention_kernel,
        out_shape=jax.ShapeDtypeStruct((B, N, D), x.dtype),
        grid_spec=pltpu.PrefetchScalarGridSpec(
            num_scalar_prefetch=0,
            grid=grid,
            in_specs=[
                pl.BlockSpec((1, tq, D), lambda b, i: (b, i, 0)),  # x tile  (for Q)
                pl.BlockSpec((1, N, D), lambda b, i: (b, 0, 0)),   # full x  (for V)
                pl.BlockSpec((1, M, D), lambda b, i: (b, 0, 0)),   # full y  (for K)
                pl.BlockSpec((D, D), lambda b, i: (0, 0)),         # Wq^T * scale
                pl.BlockSpec((D, D), lambda b, i: (0, 0)),         # Wk^T
                pl.BlockSpec((D, D), lambda b, i: (0, 0)),         # Wv^T
                pl.BlockSpec((D, D), lambda b, i: (0, 0)),         # Wproj^T
                pl.BlockSpec((1, D), lambda b, i: (0, 0)),         # bproj
            ],
            out_specs=pl.BlockSpec((1, tq, D), lambda b, i: (b, i, 0)),
            scratch_shapes=[
                pltpu.VMEM((M, D), in_dtype),   # cached K for current batch elem
                pltpu.VMEM((N, D), in_dtype),   # cached V for current batch elem
            ],
        ),
        compiler_params=pltpu.CompilerParams(**compiler_kwargs),
    )(x, x, y, wq_t, wk_t, wv_t, wp_t, bp)


def cross_attention_ref(x, y, params, *, num_heads=8):
    """Pure-JAX reference mirroring the PyTorch forward."""
    D = x.shape[-1]
    scale = (D // num_heads) ** -0.5
    q = x @ params["wq"].T
    k = y @ params["wk"].T
    v = x @ params["wv"].T
    attn = jnp.einsum("bnd,bmd->bnm", q, k) * scale
    attn = jax.nn.softmax(attn, axis=-1)
    attn = jnp.where(attn < 0.6, 0.0, attn)
    ctx = attn @ v
    return ctx @ params["wp"].T + params["bp"]


if __name__ == "__main__":
    B, N, M, D, H = 2, 8, 8, 32, 8   # dim=32, num_heads=8 -> head_dim=4, scale=0.5

    key = jax.random.PRNGKey(0)
    ks = jax.random.split(key, 7)
    x = jax.random.normal(ks[0], (B, N, D), jnp.float32)
    y = jax.random.normal(ks[1], (B, M, D), jnp.float32)
    params = {
        "wq": jax.random.normal(ks[2], (D, D), jnp.float32) * 0.1,
        "wk": jax.random.normal(ks[3], (D, D), jnp.float32) * 0.1,
        "wv": jax.random.normal(ks[4], (D, D), jnp.float32) * 0.1,
        "wp": jax.random.normal(ks[5], (D, D), jnp.float32) * 0.1,
        "bp": jax.random.normal(ks[6], (D,), jnp.float32) * 0.1,
    }

    out = cross_attention(x, y, params, num_heads=H)
    out = jax.block_until_ready(out)

    ref = cross_attention_ref(x, y, params, num_heads=H)
    assert out.shape == (B, N, D)
    assert jnp.allclose(out, ref, atol=1e-4, rtol=1e-4), "mismatch vs JAX reference"

    print("KERNEL_OK")
</pallas_src>

<mosaic_0001>
module attributes {stable_mosaic.version = 11 : i64} {
  func.func @cross_attention_kernel(%arg0: i32, %arg1: i32, %arg2: memref<1x8x32xf32, #tpu.memory_space<vmem>>, %arg3: memref<1x8x32xf32, #tpu.memory_space<vmem>>, %arg4: memref<1x8x32xf32, #tpu.memory_space<vmem>>, %arg5: memref<32x32xf32, #tpu.memory_space<vmem>>, %arg6: memref<32x32xf32, #tpu.memory_space<vmem>>, %arg7: memref<32x32xf32, #tpu.memory_space<vmem>>, %arg8: memref<32x32xf32, #tpu.memory_space<vmem>>, %arg9: memref<1x32xf32, #tpu.memory_space<vmem>>, %arg10: memref<1x8x32xf32, #tpu.memory_space<vmem>>, %arg11: memref<8x32xf32, #tpu.memory_space<vmem>>, %arg12: memref<8x32xf32, #tpu.memory_space<vmem>>) attributes {dimension_semantics = [#tpu.dimension_semantics<parallel>, #tpu.dimension_semantics<arbitrary>], iteration_bounds = array<i64: 2, 1>, scalar_prefetch = 0 : i64, scratch_operands = 2 : i64, tpu.core_type = #tpu.core_type<tc>, window_params = [{transform_indices = @transform_0, window_bounds = array<i64: 1, 8, 32>}, {transform_indices = @transform_1, window_bounds = array<i64: 1, 8, 32>}, {transform_indices = @transform_2, window_bounds = array<i64: 1, 8, 32>}, {pipeline_mode = #tpu.pipeline_mode<synchronous>, transform_indices = @transform_3, window_bounds = array<i64: 32, 32>}, {pipeline_mode = #tpu.pipeline_mode<synchronous>, transform_indices = @transform_4, window_bounds = array<i64: 32, 32>}, {pipeline_mode = #tpu.pipeline_mode<synchronous>, transform_indices = @transform_5, window_bounds = array<i64: 32, 32>}, {pipeline_mode = #tpu.pipeline_mode<synchronous>, transform_indices = @transform_6, window_bounds = array<i64: 32, 32>}, {pipeline_mode = #tpu.pipeline_mode<synchronous>, transform_indices = @transform_7, window_bounds = array<i64: 1, 32>}, {transform_indices = @transform_8, window_bounds = array<i64: 1, 8, 32>}]} {
    %c0_i32 = arith.constant 0 : i32
    %0 = arith.cmpi eq, %arg1, %c0_i32 : i32
    %1 = arith.extui %0 : i1 to i32
    %c0_i32_0 = arith.constant 0 : i32
    %2 = arith.cmpi ne, %1, %c0_i32_0 : i32
    scf.if %2 {
      %c0_23 = arith.constant 0 : index
      %c0_24 = arith.constant 0 : index
      %c0_25 = arith.constant 0 : index
      %35 = vector.load %arg4[%c0_23, %c0_24, %c0_25] : memref<1x8x32xf32, #tpu.memory_space<vmem>>, vector<1x8x32xf32>
      %36 = vector.shape_cast %35 : vector<1x8x32xf32> to vector<8x32xf32>
      %c0_26 = arith.constant 0 : index
      %c0_27 = arith.constant 0 : index
      %37 = vector.load %arg6[%c0_26, %c0_27] : memref<32x32xf32, #tpu.memory_space<vmem>>, vector<32x32xf32>
      %cst_28 = arith.constant dense<0.000000e+00> : vector<8x32xf32>
      %38 = tpu.matmul %36, %37, %cst_28 {dimension_numbers = #tpu.dot_dimension_numbers<[1], [0], [0], [1], [0, 0, 1, 1], [], []>} : vector<8x32xf32>, vector<32x32xf32>, vector<8x32xf32> -> vector<8x32xf32>
      %c0_29 = arith.constant 0 : index
      %c0_30 = arith.constant 0 : index
      %39 = vector.load %arg11[%c0_29, %c0_30] : memref<8x32xf32, #tpu.memory_space<vmem>>, vector<8x32xf32>
      tpu.vector_store %arg11[%c0_29, %c0_30], %38 {strides = array<i32>} : memref<8x32xf32, #tpu.memory_space<vmem>>, vector<8x32xf32>,
      %c0_31 = arith.constant 0 : index
      %c0_32 = arith.constant 0 : index
      %c0_33 = arith.constant 0 : index
      %40 = vector.load %arg3[%c0_31, %c0_32, %c0_33] : memref<1x8x32xf32, #tpu.memory_space<vmem>>, vector<1x8x32xf32>
      %41 = vector.shape_cast %40 : vector<1x8x32xf32> to vector<8x32xf32>
      %c0_34 = arith.constant 0 : index
      %c0_35 = arith.constant 0 : index
      %42 = vector.load %arg7[%c0_34, %c0_35] : memref<32x32xf32, #tpu.memory_space<vmem>>, vector<32x32xf32>
      %cst_36 = arith.constant dense<0.000000e+00> : vector<8x32xf32>
      %43 = tpu.matmul %41, %42, %cst_36 {dimension_numbers = #tpu.dot_dimension_numbers<[1], [0], [0], [1], [0, 0, 1, 1], [], []>} : vector<8x32xf32>, vector<32x32xf32>, vector<8x32xf32> -> vector<8x32xf32>
      %c0_37 = arith.constant 0 : index
      %c0_38 = arith.constant 0 : index
      %44 = vector.load %arg12[%c0_37, %c0_38] : memref<8x32xf32, #tpu.memory_space<vmem>>, vector<8x32xf32>
      tpu.vector_store %arg12[%c0_37, %c0_38], %43 {strides = array<i32>} : memref<8x32xf32, #tpu.memory_space<vmem>>, vector<8x32xf32>,
    } else {
    }
    %c0 = arith.constant 0 : index
    %c0_1 = arith.constant 0 : index
    %c0_2 = arith.constant 0 : index
    %3 = vector.load %arg2[%c0, %c0_1, %c0_2] : memref<1x8x32xf32, #tpu.memory_space<vmem>>, vector<1x8x32xf32>
    %4 = vector.shape_cast %3 : vector<1x8x32xf32> to vector<8x32xf32>
    %c0_3 = arith.constant 0 : index
    %c0_4 = arith.constant 0 : index
    %5 = vector.load %arg5[%c0_3, %c0_4] : memref<32x32xf32, #tpu.memory_space<vmem>>, vector<32x32xf32>
    %cst = arith.constant dense<0.000000e+00> : vector<8x32xf32>
    %6 = tpu.matmul %4, %5, %cst {dimension_numbers = #tpu.dot_dimension_numbers<[1], [0], [0], [1], [0, 0, 1, 1], [], []>} : vector<8x32xf32>, vector<32x32xf32>, vector<8x32xf32> -> vector<8x32xf32>
    %c0_5 = arith.constant 0 : index
    %c0_6 = arith.constant 0 : index
    %7 = vector.load %arg11[%c0_5, %c0_6] : memref<8x32xf32, #tpu.memory_space<vmem>>, vector<8x32xf32>
    %cst_7 = arith.constant dense<0.000000e+00> : vector<8x8xf32>
    %8 = tpu.matmul %6, %7, %cst_7 {dimension_numbers = #tpu.dot_dimension_numbers<[1], [1], [0], [0], [0, 0, 1, 0], [], []>} : vector<8x32xf32>, vector<8x32xf32>, vector<8x8xf32> -> vector<8x8xf32>
    %cst_8 = arith.constant dense<0xFF800000> : vector<8xf32>
    %9 = vector.multi_reduction <maximumf>, %8, %cst_8 [1] : vector<8x8xf32> to vector<8xf32>
    %10 = vector.shape_cast %9 : vector<8xf32> to vector<8x1xf32>
    %11 = vector.broadcast %10 : vector<8x1xf32> to vector<8x8xf32>
    %12 = arith.subf %8, %11 : vector<8x8xf32>
    %13 = math.exp %12 : vector<8x8xf32>
    %cst_9 = arith.constant dense<0.000000e+00> : vector<8xf32>
    %14 = vector.multi_reduction <add>, %13, %cst_9 [1] : vector<8x8xf32> to vector<8xf32>
    %15 = vector.shape_cast %14 : vector<8xf32> to vector<8x1xf32>
    %cst_10 = arith.constant 6.000000e-01 : f32
    %16 = vector.broadcast %cst_10 : f32 to vector<8x1xf32>
    %17 = arith.mulf %16, %15 : vector<8x1xf32>
    %18 = vector.broadcast %17 : vector<8x1xf32> to vector<8x8xf32>
    %19 = arith.cmpf olt, %13, %18 : vector<8x8xf32>
    %cst_11 = arith.constant 0.000000e+00 : f32
    %20 = vector.broadcast %cst_11 : f32 to vector<8x8xf32>
    %21 = arith.select %19, %20, %13 : vector<8x8xi1>, vector<8x8xf32>
    %22 = tpu.reciprocal %15 : vector<8x1xf32> -> vector<8x1xf32>
    %23 = vector.broadcast %22 : vector<8x1xf32> to vector<8x8xf32>
    %24 = arith.mulf %21, %23 : vector<8x8xf32>
    %c0_12 = arith.constant 0 : index
    %c0_13 = arith.constant 0 : index
    %25 = vector.load %arg12[%c0_12, %c0_13] : memref<8x32xf32, #tpu.memory_space<vmem>>, vector<8x32xf32>
    %cst_14 = arith.constant dense<0.000000e+00> : vector<8x32xf32>
    %26 = tpu.matmul %24, %25, %cst_14 {dimension_numbers = #tpu.dot_dimension_numbers<[1], [0], [0], [1], [0, 0, 1, 1], [], []>} : vector<8x8xf32>, vector<8x32xf32>, vector<8x32xf32> -> vector<8x32xf32>
    %c0_15 = arith.constant 0 : index
    %c0_16 = arith.constant 0 : index
    %27 = vector.load %arg8[%c0_15, %c0_16] : memref<32x32xf32, #tpu.memory_space<vmem>>, vector<32x32xf32>
    %cst_17 = arith.constant dense<0.000000e+00> : vector<8x32xf32>
    %28 = tpu.matmul %26, %27, %cst_17 {dimension_numbers = #tpu.dot_dimension_numbers<[1], [0], [0], [1], [0, 0, 1, 1], [], []>} : vector<8x32xf32>, vector<32x32xf32>, vector<8x32xf32> -> vector<8x32xf32>
    %c0_18 = arith.constant 0 : index
    %c0_19 = arith.constant 0 : index
    %29 = vector.load %arg9[%c0_18, %c0_19] : memref<1x32xf32, #tpu.memory_space<vmem>>, vector<1x32xf32>
    %30 = vector.broadcast %29 : vector<1x32xf32> to vector<8x32xf32>
    %31 = arith.addf %28, %30 : vector<8x32xf32>
    %c0_20 = arith.constant 0 : index
    %c0_21 = arith.constant 0 : index
    %c0_22 = arith.constant 0 : index
    %32 = vector.load %arg10[%c0_20, %c0_21, %c0_22] : memref<1x8x32xf32, #tpu.memory_space<vmem>>, vector<1x8x32xf32>
    %33 = vector.shape_cast %32 : vector<1x8x32xf32> to vector<8x32xf32>
    %34 = vector.shape_cast %31 : vector<8x32xf32> to vector<1x8x32xf32>
    tpu.vector_store %arg10[%c0_20, %c0_21, %c0_22], %34 {strides = array<i32>} : memref<1x8x32xf32, #tpu.memory_space<vmem>>, vector<1x8x32xf32>,
    return
  }
  func.func @transform_0(%arg0: i32, %arg1: i32) -> (i32, i32, i32) {
    %c0_i32 = arith.constant 0 : i32
    %c0_i32_0 = arith.constant 0 : i32
    return %arg0, %arg1, %c0_i32 : i32, i32, i32
  }
  func.func @transform_1(%arg0: i32, %arg1: i32) -> (i32, i32, i32) {
    %c0_i32 = arith.constant 0 : i32
    %c0_i32_0 = arith.constant 0 : i32
    %c0_i32_1 = arith.constant 0 : i32
    return %arg0, %c0_i32, %c0_i32_0 : i32, i32, i32
  }
  func.func @transform_2(%arg0: i32, %arg1: i32) -> (i32, i32, i32) {
    %c0_i32 = arith.constant 0 : i32
    %c0_i32_0 = arith.constant 0 : i32
    %c0_i32_1 = arith.constant 0 : i32
    return %arg0, %c0_i32, %c0_i32_0 : i32, i32, i32
  }
  func.func @transform_3(%arg0: i32, %arg1: i32) -> (i32, i32) {
    %c0_i32 = arith.constant 0 : i32
    %c0_i32_0 = arith.constant 0 : i32
    %c0_i32_1 = arith.constant 0 : i32
    return %c0_i32, %c0_i32_0 : i32, i32
  }
  func.func @transform_4(%arg0: i32, %arg1: i32) -> (i32, i32) {
    %c0_i32 = arith.constant 0 : i32
    %c0_i32_0 = arith.constant 0 : i32
    %c0_i32_1 = arith.constant 0 : i32
    return %c0_i32, %c0_i32_0 : i32, i32
  }
  func.func @transform_5(%arg0: i32, %arg1: i32) -> (i32, i32) {
    %c0_i32 = arith.constant 0 : i32
    %c0_i32_0 = arith.constant 0 : i32
    %c0_i32_1 = arith.constant 0 : i32
    return %c0_i32, %c0_i32_0 : i32, i32
  }
  func.func @transform_6(%arg0: i32, %arg1: i32) -> (i32, i32) {
    %c0_i32 = arith.constant 0 : i32
    %c0_i32_0 = arith.constant 0 : i32
    %c0_i32_1 = arith.constant 0 : i32
    return %c0_i32, %c0_i32_0 : i32, i32
  }
  func.func @transform_7(%arg0: i32, %arg1: i32) -> (i32, i32) {
    %c0_i32 = arith.constant 0 : i32
    %c0_i32_0 = arith.constant 0 : i32
    %c0_i32_1 = arith.constant 0 : i32
    return %c0_i32, %c0_i32_0 : i32, i32
  }
  func.func @transform_8(%arg0: i32, %arg1: i32) -> (i32, i32, i32) {
    %c0_i32 = arith.constant 0 : i32
    %c0_i32_0 = arith.constant 0 : i32
    return %arg0, %arg1, %c0_i32 : i32, i32, i32
  }
}

</mosaic_0001>

<llo_original>
// kernel: tpu_custom_call.1
$region0: #{tpu_custom_call.1}
  #allocation0 [shape = 'u32[]', space=smem, size = 0x4, offset = 0x4, fixed_abs, tag = 'smem constant byte address 0x4 - core index']
  #allocation1 [shape = 'u32[144,128]{1,0:T(1,128)}', space=vmem, size = 0x12000, scoped, tag = 'internal scratch']
  #allocation2 [shape = 'f32[8,32]{1,0:T(8,128)}', space=vmem, size = 0x1000, scoped, tag = 'scratch operand']
  #allocation3 [shape = 'f32[8,32]{1,0:T(8,128)}', space=vmem, size = 0x1000, scoped, tag = 'scratch operand']
  %s0 = inlined_call_operand.hbm [shape: f32[2,8,32], index: 0, kind: input, shape index: {}]
  %s1 = inlined_call_operand.hbm [shape: f32[2,8,32], index: 1, kind: input, shape index: {}]
  %s2 = inlined_call_operand.hbm [shape: f32[2,8,32], index: 2, kind: input, shape index: {}]
  %s3 = inlined_call_operand.hbm [shape: f32[32,32], index: 3, kind: input, shape index: {}]
  %s4 = inlined_call_operand.hbm [shape: f32[32,32], index: 4, kind: input, shape index: {}]
  %s5 = inlined_call_operand.hbm [shape: f32[32,32], index: 5, kind: input, shape index: {}]
  %s6 = inlined_call_operand.hbm [shape: f32[32,32], index: 6, kind: input, shape index: {}]
  %s7 = inlined_call_operand.vmem [shape: f32[1,32], index: 7, kind: input, shape index: {}]
  %s8 = inlined_call_operand.hbm [shape: f32[2,8,32], index: 8, kind: output, shape index: {}]
  %s9 = sld [smem:[#allocation0]]
  $region97: #{tpu_custom_call.1} parent=0
    _
  %s11 = ssub.s32 1, %s9
  %s12 = scalar_select 0, %s11, %s9
  $region1: #{tpu_custom_call.1} parent=0
    #allocation4 [shape = 'u8[8192]{0}', space=vmem, size = 0x2000, scoped, tag = 'input window, operand 0']
    #allocation5 [shape = 's32[2]{0}', space=sflag, size = 0x8, scoped, tag = 'scoped memory for tpu_custom_call.1']
    #allocation6 [shape = 's32[2]{0}', space=sflag, size = 0x8, scoped, tag = 'scoped memory for tpu_custom_call.1']
    #allocation7 [shape = 'u8[8192]{0}', space=vmem, size = 0x2000, scoped, tag = 'input window, operand 1']
    #allocation8 [shape = 's32[2]{0}', space=sflag, size = 0x8, scoped, tag = 'scoped memory for tpu_custom_call.1']
    #allocation9 [shape = 'u8[8192]{0}', space=vmem, size = 0x2000, scoped, tag = 'input window, operand 2']
    #allocation10 [shape = 'u8[16384]{0}', space=vmem, size = 0x4000, scoped, tag = 'input window, operand 3, single buffered']
    #allocation11 [shape = 's32[1]{0}', space=sflag, size = 0x4, scoped, tag = 'scoped memory for tpu_custom_call.1']
    #allocation12 [shape = 'u8[16384]{0}', space=vmem, size = 0x4000, scoped, tag = 'input window, operand 4, single buffered']
    #allocation13 [shape = 'u8[16384]{0}', space=vmem, size = 0x4000, scoped, tag = 'input window, operand 5, single buffered']
    #allocation14 [shape = 's32[1]{0}', space=sflag, size = 0x4, scoped, tag = 'scoped memory for tpu_custom_call.1']
    #allocation15 [shape = 'u8[16384]{0}', space=vmem, size = 0x4000, scoped, tag = 'input window, operand 6, single buffered']
    #allocation16 [shape = 'u8[8192]{0}', space=vmem, size = 0x2000, scoped, tag = 'output window, operand 0']
    %13 = vsyncpa [#allocation5], 0
    %s14 = scalar_lea.sflag [#allocation5], 1
    %15 = vsyncpa %s14, 0
    %16 = vsyncpa [#allocation8], 0
    %s17 = scalar_lea.sflag [#allocation8], 1
    %18 = vsyncpa %s17, 0
    %19 = vsyncpa [#allocation11], 0
    %20 = vsyncpa [#allocation14], 0
    %21 = vsyncpa [#allocation6], 0
    %s22 = scalar_lea.sflag [#allocation6], 1
    %23 = vsyncpa %s22, 0
    loop: start=0, step=1, limit=4
    $region2: #{tpu_custom_call.1} parent=1 // loop_pre_header
      _
    $region3: #{tpu_custom_call.1} parent=1 // loop_header
      %s25 = sphi 0, %s29
      %p26 = scmp.ge.s32.totalorder %s25, 4
      %s32 = sphi 0, %s44
      %s33 = sphi 0, %s40
      %s34 = sphi 0, %s32
      %s35 = sphi 0, %s33
      %s36 = sphi 0, %s34
      %s37 = sphi 0, %s35
      %s49 = sphi 0, %s51
      %s52 = sphi 0, %s49
      %s53 = sphi 0, %s52
      %s69 = sphi 0, %s53
      %s75 = sphi 0, %s77
      %s78 = sphi 0, %s75
      %s79 = sphi 0, %s78
      %s95 = sphi 0, %s79
      %s101 = sphi 0, %s103
      %s104 = sphi 0, %s101
      %s105 = sphi 0, %s104
      %s121 = sphi 0, %s105
      %s125 = sphi 0, %s125
      %s127 = sphi 0, %s125
      %s128 = sphi 0, %s127
      %s142 = sphi 0, %s128
      %s146 = sphi 0, %s146
      %s148 = sphi 0, %s146
      %s149 = sphi 0, %s148
      %s163 = sphi 0, %s149
      %s167 = sphi 0, %s167
      %s169 = sphi 0, %s167
      %s170 = sphi 0, %s169
      %s184 = sphi 0, %s170
      %s188 = sphi 0, %s188
      %s190 = sphi 0, %s188
      %s191 = sphi 0, %s190
      %s205 = sphi 0, %s191
      %s209 = sphi 0, %s209
      %s211 = sphi 0, %s209
      %s212 = sphi 0, %s211
      %s226 = sphi 0, %s212
      %s234 = sphi 0, %s236
      %s237 = sphi 0, %s234
      %s238 = sphi 0, %s237
      %s254 = sphi 0, %s238
    $region4: #{tpu_custom_call.1} parent=1 // loop_header_branch
      %28 = sbr.rel (%p26) target = $region8
    $region5: #{tpu_custom_call.1} parent=1 // loop_body
      %s30 = ssub.s32 %s25, 1
      %s31 = ssub.s32 %s25, 2
      %s38 = sadd.s32 1, %s33
      %p39 = scmp.ge.s32.totalorder %s38, 1
      %s40 = scalar_select %p39, 0, %s38
      %s41 = sadd.s32 1, %s32
      %s42 = scalar_select %p39, %s41, %s32
      %p43 = scmp.ge.s32.totalorder %s42, 2
      %s44 = scalar_select %p43, 0, %s42
      %s45 = ssub.s32 %s32, %s44
      %s46 = ssub.s32 %s33, %s40
      %s47 = sor.u32 %s45, %s46
      %p48 = scmp.eq.s32.totalorder %s47, 0
      %s50 = sadd.s32 %s49, 1
      %s51 = scalar_select %p48, %s49, %s50
      %p54 = pneg %p48
      %p55 = scmp.eq.s32.totalorder %s25, 1
      %p56 = por %p54, %p55
      %p57 = scmp.ne.s32.totalorder %s49, %s52
      %p58 = scmp.eq.s32.totalorder %s25, 0
      %p59 = por %p57, %p58
      %p60 = scmp.ne.s32.totalorder %s49, %s52
      %p61 = scmp.eq.s32.totalorder %s30, 1
      %p62 = por %p60, %p61
      %p63 = scmp.ne.s32.totalorder %s52, %s53
      %p64 = scmp.eq.s32.totalorder %s30, 0
      %p65 = por %p63, %p64
      %p66 = scmp.ne.s32.totalorder %s52, %s53
      %p67 = scmp.eq.s32.totalorder %s31, 1
      %p68 = por %p66, %p67
      %p70 = scmp.ne.s32.totalorder %s53, %s69
      %p71 = scmp.eq.s32.totalorder %s31, 0
      %p72 = por %p70, %p71
      %s73 = ssub.s32 %s32, %s44
      %p74 = scmp.eq.s32.totalorder %s73, 0
      %s76 = sadd.s32 %s75, 1
      %s77 = scalar_select %p74, %s75, %s76
      %p80 = pneg %p74
      %p81 = scmp.eq.s32.totalorder %s25, 1
      %p82 = por %p80, %p81
      %p83 = scmp.ne.s32.totalorder %s75, %s78
      %p84 = scmp.eq.s32.totalorder %s25, 0
      %p85 = por %p83, %p84
      %p86 = scmp.ne.s32.totalorder %s75, %s78
      %p87 = scmp.eq.s32.totalorder %s30, 1
      %p88 = por %p86, %p87
      %p89 = scmp.ne.s32.totalorder %s78, %s79
      %p90 = scmp.eq.s32.totalorder %s30, 0
      %p91 = por %p89, %p90
      %p92 = scmp.ne.s32.totalorder %s78, %s79
      %p93 = scmp.eq.s32.totalorder %s31, 1
      %p94 = por %p92, %p93
      %p96 = scmp.ne.s32.totalorder %s79, %s95
      %p97 = scmp.eq.s32.totalorder %s31, 0
      %p98 = por %p96, %p97
      %s99 = ssub.s32 %s32, %s44
      %p100 = scmp.eq.s32.totalorder %s99, 0
      %s102 = sadd.s32 %s101, 1
      %s103 = scalar_select %p100, %s101, %s102
      %p106 = pneg %p100
      %p107 = scmp.eq.s32.totalorder %s25, 1
      %p108 = por %p106, %p107
      %p109 = scmp.ne.s32.totalorder %s101, %s104
      %p110 = scmp.eq.s32.totalorder %s25, 0
      %p111 = por %p109, %p110
      %p112 = scmp.ne.s32.totalorder %s101, %s104
      %p113 = scmp.eq.s32.totalorder %s30, 1
      %p114 = por %p112, %p113
      %p115 = scmp.ne.s32.totalorder %s104, %s105
      %p116 = scmp.eq.s32.totalorder %s30, 0
      %p117 = por %p115, %p116
      %p118 = scmp.ne.s32.totalorder %s104, %s105
      %p119 = scmp.eq.s32.totalorder %s31, 1
      %p120 = por %p118, %p119
      %p122 = scmp.ne.s32.totalorder %s105, %s121
      %p123 = scmp.eq.s32.totalorder %s31, 0
      %p124 = por %p122, %p123
      %s126 = sadd.s32 %s125, 1
      %p129 = scmp.eq.s32.totalorder %s25, 1
      %p130 = scmp.ne.s32.totalorder %s125, %s127
      %p131 = scmp.eq.s32.totalorder %s25, 0
      %p132 = por %p130, %p131
      %p133 = scmp.ne.s32.totalorder %s125, %s127
      %p134 = scmp.eq.s32.totalorder %s30, 1
      %p135 = por %p133, %p134
      %p136 = scmp.ne.s32.totalorder %s127, %s128
      %p137 = scmp.eq.s32.totalorder %s30, 0
      %p138 = por %p136, %p137
      %p139 = scmp.ne.s32.totalorder %s127, %s128
      %p140 = scmp.eq.s32.totalorder %s31, 1
      %p141 = por %p139, %p140
      %p143 = scmp.ne.s32.totalorder %s128, %s142
      %p144 = scmp.eq.s32.totalorder %s31, 0
      %p145 = por %p143, %p144
      %s147 = sadd.s32 %s146, 1
      %p150 = scmp.eq.s32.totalorder %s25, 1
      %p151 = scmp.ne.s32.totalorder %s146, %s148
      %p152 = scmp.eq.s32.totalorder %s25, 0
      %p153 = por %p151, %p152
      %p154 = scmp.ne.s32.totalorder %s146, %s148
      %p155 = scmp.eq.s32.totalorder %s30, 1
      %p156 = por %p154, %p155
      %p157 = scmp.ne.s32.totalorder %s148, %s149
      %p158 = scmp.eq.s32.totalorder %s30, 0
      %p159 = por %p157, %p158
      %p160 = scmp.ne.s32.totalorder %s148, %s149
      %p161 = scmp.eq.s32.totalorder %s31, 1
      %p162 = por %p160, %p161
      %p164 = scmp.ne.s32.totalorder %s149, %s163
      %p165 = scmp.eq.s32.totalorder %s31, 0
      %p166 = por %p164, %p165
      %s168 = sadd.s32 %s167, 1
      %p171 = scmp.eq.s32.totalorder %s25, 1
      %p172 = scmp.ne.s32.totalorder %s167, %s169
      %p173 = scmp.eq.s32.totalorder %s25, 0
      %p174 = por %p172, %p173
      %p175 = scmp.ne.s32.totalorder %s167, %s169
      %p176 = scmp.eq.s32.totalorder %s30, 1
      %p177 = por %p175, %p176
      %p178 = scmp.ne.s32.totalorder %s169, %s170
      %p179 = scmp.eq.s32.totalorder %s30, 0
      %p180 = por %p178, %p179
      %p181 = scmp.ne.s32.totalorder %s169, %s170
      %p182 = scmp.eq.s32.totalorder %s31, 1
      %p183 = por %p181, %p182
      %p185 = scmp.ne.s32.totalorder %s170, %s184
      %p186 = scmp.eq.s32.totalorder %s31, 0
      %p187 = por %p185, %p186
      %s189 = sadd.s32 %s188, 1
      %p192 = scmp.eq.s32.totalorder %s25, 1
      %p193 = scmp.ne.s32.totalorder %s188, %s190
      %p194 = scmp.eq.s32.totalorder %s25, 0
      %p195 = por %p193, %p194
      %p196 = scmp.ne.s32.totalorder %s188, %s190
      %p197 = scmp.eq.s32.totalorder %s30, 1
      %p198 = por %p196, %p197
      %p199 = scmp.ne.s32.totalorder %s190, %s191
      %p200 = scmp.eq.s32.totalorder %s30, 0
      %p201 = por %p199, %p200
      %p202 = scmp.ne.s32.totalorder %s190, %s191
      %p203 = scmp.eq.s32.totalorder %s31, 1
      %p204 = por %p202, %p203
      %p206 = scmp.ne.s32.totalorder %s191, %s205
      %p207 = scmp.eq.s32.totalorder %s31, 0
      %p208 = por %p206, %p207
      %s210 = sadd.s32 %s209, 1
      %p213 = scmp.eq.s32.totalorder %s25, 1
      %p214 = scmp.ne.s32.totalorder %s209, %s211
      %p215 = scmp.eq.s32.totalorder %s25, 0
      %p216 = por %p214, %p215
      %p217 = scmp.ne.s32.totalorder %s209, %s211
      %p218 = scmp.eq.s32.totalorder %s30, 1
      %p219 = por %p217, %p218
      %p220 = scmp.ne.s32.totalorder %s211, %s212
      %p221 = scmp.eq.s32.totalorder %s30, 0
      %p222 = por %p220, %p221
      %p223 = scmp.ne.s32.totalorder %s211, %s212
      %p224 = scmp.eq.s32.totalorder %s31, 1
      %p225 = por %p223, %p224
      %p227 = scmp.ne.s32.totalorder %s212, %s226
      %p228 = scmp.eq.s32.totalorder %s31, 0
      %p229 = por %p227, %p228
      %s230 = ssub.s32 %s32, %s44
      %s231 = ssub.s32 %s33, %s40
      %s232 = sor.u32 %s230, %s231
      %p233 = scmp.eq.s32.totalorder %s232, 0
      %s235 = sadd.s32 %s234, 1
      %s236 = scalar_select %p233, %s234, %s235
      %p239 = pneg %p233
      %p240 = scmp.eq.s32.totalorder %s25, 1
      %p241 = por %p239, %p240
      %p242 = scmp.ne.s32.totalorder %s234, %s237
      %p243 = scmp.eq.s32.totalorder %s25, 0
      %p244 = por %p242, %p243
      %p245 = scmp.ne.s32.totalorder %s234, %s237
      %p246 = scmp.eq.s32.totalorder %s30, 1
      %p247 = por %p245, %p246
      %p248 = scmp.ne.s32.totalorder %s237, %s238
      %p249 = scmp.eq.s32.totalorder %s30, 0
      %p250 = por %p248, %p249
      %p251 = scmp.ne.s32.totalorder %s237, %s238
      %p252 = scmp.eq.s32.totalorder %s31, 1
      %p253 = por %p251, %p252
      %p255 = scmp.ne.s32.totalorder %s238, %s254
      %p256 = scmp.eq.s32.totalorder %s31, 0
      %p257 = por %p255, %p256
      %p258 = scmp.le.s32.totalorder 1, %s25
      %p259 = scmp.lt.s32.totalorder %s25, 3
      %p260 = pnand %p258, %p259
      %p261 = pneg %p260
      // Predicated region
      $region9: #{tpu_custom_call.1} parent=5 // pred_check
        _
      $region10: #{tpu_custom_call.1} parent=5 // pred_check_branch
        %263 = sbr.rel (%p260) target = $region12
      $region11: #{tpu_custom_call.1} parent=5 // pred_region
        %s264 = ssub.s32 %s25, 1
        // Predicated region
        $region13: #{tpu_custom_call.1} parent=11 // pred_check
          %p265 = pneg %p138
        $region14: #{tpu_custom_call.1} parent=11 // pred_check_branch
          %267 = sbr.rel (%p265) target = $region16
        $region15: #{tpu_custom_call.1} parent=11 // pred_region
          %s269 = ssub.s32 512, 512
          %270 = vsyncadd [#allocation11], %s269
          %s271 = sshll.u32 [#allocation10], 4
          %s272 = int_to_ptr.vmem [resolvable:$true] %s271
          %277 = dma.hbm_to_vmem [thread:$0]  %s3, 512, %s272, [#allocation11], 128, 128, 8
        $region16: #{tpu_custom_call.1} parent=11 // pred_fallthru
          _
        // Predicated region
        $region17: #{tpu_custom_call.1} parent=11 // pred_check
          %p278 = pneg %p159
        $region18: #{tpu_custom_call.1} parent=11 // pred_check_branch
          %280 = sbr.rel (%p278) target = $region20
        $region19: #{tpu_custom_call.1} parent=11 // pred_region
          %s282 = ssub.s32 512, 512
          %283 = vsyncadd [#allocation11], %s282
          %s284 = sshll.u32 [#allocation12], 4
          %s285 = int_to_ptr.vmem [resolvable:$true] %s284
          %290 = dma.hbm_to_vmem [thread:$0]  %s4, 512, %s285, [#allocation11], 128, 128, 8
        $region20: #{tpu_custom_call.1} parent=11 // pred_fallthru
          _
        // Predicated region
        $region21: #{tpu_custom_call.1} parent=11 // pred_check
          %p291 = pneg %p180
        $region22: #{tpu_custom_call.1} parent=11 // pred_check_branch
          %293 = sbr.rel (%p291) target = $region24
        $region23: #{tpu_custom_call.1} parent=11 // pred_region
          %s295 = ssub.s32 512, 512
          %296 = vsyncadd [#allocation14], %s295
          %s297 = sshll.u32 [#allocation13], 4
          %s298 = int_to_ptr.vmem [resolvable:$true] %s297
          %303 = dma.hbm_to_vmem [thread:$0]  %s5, 512, %s298, [#allocation14], 128, 128, 8
        $region24: #{tpu_custom_call.1} parent=11 // pred_fallthru
          _
        // Predicated region
        $region25: #{tpu_custom_call.1} parent=11 // pred_check
          %p304 = pneg %p201
        $region26: #{tpu_custom_call.1} parent=11 // pred_check_branch
          %306 = sbr.rel (%p304) target = $region28
        $region27: #{tpu_custom_call.1} parent=11 // pred_region
          %s308 = ssub.s32 512, 512
          %309 = vsyncadd [#allocation14], %s308
          %s310 = sshll.u32 [#allocation15], 4
          %s311 = int_to_ptr.vmem [resolvable:$true] %s310
          %316 = dma.hbm_to_vmem [thread:$0]  %s6, 512, %s311, [#allocation14], 128, 128, 8
        $region28: #{tpu_custom_call.1} parent=11 // pred_fallthru
          _
        // Predicated region
        $region29: #{tpu_custom_call.1} parent=11 // pred_check
          %p317 = pneg %p222
        $region30: #{tpu_custom_call.1} parent=11 // pred_check_branch
          %319 = sbr.rel (%p317) target = $region32
        $region31: #{tpu_custom_call.1} parent=11 // pred_region
          _
        $region32: #{tpu_custom_call.1} parent=11 // pred_fallthru
          _
      $region12: #{tpu_custom_call.1} parent=5 // pred_fallthru
        _
      %p320 = scmp.lt.s32.totalorder %s25, 2
      // Predicated region
      $region33: #{tpu_custom_call.1} parent=5 // pred_check
        %p321 = pneg %p320
      $region34: #{tpu_custom_call.1} parent=5 // pred_check_branch
        %323 = sbr.rel (%p321) target = $region36
      $region35: #{tpu_custom_call.1} parent=5 // pred_region
        // Predicated region
        $region37: #{tpu_custom_call.1} parent=35 // pred_check
          %p324 = pneg %p59
        $region38: #{tpu_custom_call.1} parent=35 // pred_check_branch
          %326 = sbr.rel (%p324) target = $region40
        $region39: #{tpu_custom_call.1} parent=35 // pred_region
          %s327 = sand.u32 %s49, 1
          %s328 = scalar_lea.sflag [#allocation5], %s327
          %s329 = sand.u32 %s49, 1
          %s330 = smul.addr %s329, 8
          %s331 = scalar_lea.vmem [#allocation4], %s330
          %s333 = ssub.s32 128, 128
          %334 = vsyncadd %s328, %s333
          %s335 = sadd.s32 %s33, %s32
          %s336 = smul.addr %s335, 128
          %s337 = scalar_lea.hbm %s0, %s336
          %s339 = sshll.u32 %s331, 4
          %s340 = int_to_ptr.vmem [resolvable:$true] %s339
          %342 = dma.hbm_to_vmem [thread:$0]  %s337, 128, %s340, %s328
        $region40: #{tpu_custom_call.1} parent=35 // pred_fallthru
          _
        // Predicated region
        $region41: #{tpu_custom_call.1} parent=35 // pred_check
          %p343 = pneg %p85
        $region42: #{tpu_custom_call.1} parent=35 // pred_check_branch
          %345 = sbr.rel (%p343) target = $region44
        $region43: #{tpu_custom_call.1} parent=35 // pred_region
          %s346 = sand.u32 %s25, 1
          %s347 = scalar_lea.sflag [#allocation8], %s346
          %s348 = sand.u32 %s75, 1
          %s349 = smul.addr %s348, 8
          %s350 = scalar_lea.vmem [#allocation7], %s349
          %s352 = ssub.s32 128, 128
          %353 = vsyncadd %s347, %s352
          %s354 = smul.addr %s32, 128
          %s355 = scalar_lea.hbm %s1, %s354
          %s357 = sshll.u32 %s350, 4
          %s358 = int_to_ptr.vmem [resolvable:$true] %s357
          %360 = dma.hbm_to_vmem [thread:$0]  %s355, 128, %s358, %s347
        $region44: #{tpu_custom_call.1} parent=35 // pred_fallthru
          _
        // Predicated region
        $region45: #{tpu_custom_call.1} parent=35 // pred_check
          %p361 = pneg %p111
        $region46: #{tpu_custom_call.1} parent=35 // pred_check_branch
          %363 = sbr.rel (%p361) target = $region48
        $region47: #{tpu_custom_call.1} parent=35 // pred_region
          %s364 = sand.u32 %s25, 1
          %s365 = scalar_lea.sflag [#allocation8], %s364
          %s366 = sand.u32 %s101, 1
          %s367 = smul.addr %s366, 8
          %s368 = scalar_lea.vmem [#allocation9], %s367
          %s370 = ssub.s32 128, 128
          %371 = vsyncadd %s365, %s370
          %s372 = smul.addr %s32, 128
          %s373 = scalar_lea.hbm %s2, %s372
          %s375 = sshll.u32 %s368, 4
          %s376 = int_to_ptr.vmem [resolvable:$true] %s375
          %378 = dma.hbm_to_vmem [thread:$0]  %s373, 128, %s376, %s365
        $region48: #{tpu_custom_call.1} parent=35 // pred_fallthru
          _
      $region36: #{tpu_custom_call.1} parent=5 // pred_fallthru
        _
      %p379 = scmp.le.s32.totalorder 1, %s25
      %p380 = scmp.lt.s32.totalorder %s25, 3
      %p381 = pnand %p379, %p380
      %p382 = pneg %p381
      // Predicated region
      $region49: #{tpu_custom_call.1} parent=5 // pred_check
        _
      $region50: #{tpu_custom_call.1} parent=5 // pred_check_branch
        %384 = sbr.rel (%p381) target = $region52
      $region51: #{tpu_custom_call.1} parent=5 // pred_region
        %s385 = ssub.s32 %s25, 1
        %s386 = sand.u32 %s52, 1
        %s387 = scalar_lea.sflag [#allocation5], %s386
        %s388 = sand.u32 %s52, 1
        %s389 = smul.addr %s388, 8
        %s390 = scalar_lea.vmem [#allocation4], %s389
        // Predicated region
        $region53: #{tpu_custom_call.1} parent=51 // pred_check
          %p391 = pneg %p65
        $region54: #{tpu_custom_call.1} parent=51 // pred_check_branch
          %393 = sbr.rel (%p391) target = $region56
        $region55: #{tpu_custom_call.1} parent=51 // pred_region
          %394 = dma.done %s387, 128
        $region56: #{tpu_custom_call.1} parent=51 // pred_fallthru
          _
        %s395 = sand.u32 %s30, 1
        %s396 = scalar_lea.sflag [#allocation8], %s395
        %s397 = sand.u32 %s78, 1
        %s398 = smul.addr %s397, 8
        %s399 = scalar_lea.vmem [#allocation7], %s398
        // Predicated region
        $region57: #{tpu_custom_call.1} parent=51 // pred_check
          %p400 = pneg %p91
        $region58: #{tpu_custom_call.1} parent=51 // pred_check_branch
          %402 = sbr.rel (%p400) target = $region60
        $region59: #{tpu_custom_call.1} parent=51 // pred_region
          %403 = dma.done %s396, 128
        $region60: #{tpu_custom_call.1} parent=51 // pred_fallthru
          _
        %s404 = sand.u32 %s30, 1
        %s405 = scalar_lea.sflag [#allocation8], %s404
        %s406 = sand.u32 %s104, 1
        %s407 = smul.addr %s406, 8
        %s408 = scalar_lea.vmem [#allocation9], %s407
        // Predicated region
        $region61: #{tpu_custom_call.1} parent=51 // pred_check
          %p409 = pneg %p117
        $region62: #{tpu_custom_call.1} parent=51 // pred_check_branch
          %411 = sbr.rel (%p409) target = $region64
        $region63: #{tpu_custom_call.1} parent=51 // pred_region
          %412 = dma.done %s405, 128
        $region64: #{tpu_custom_call.1} parent=51 // pred_fallthru
          _
        // Predicated region
        $region65: #{tpu_custom_call.1} parent=51 // pred_check
          %p413 = pneg %p138
        $region66: #{tpu_custom_call.1} parent=51 // pred_check_branch
          %415 = sbr.rel (%p413) target = $region68
        $region67: #{tpu_custom_call.1} parent=51 // pred_region
          %416 = dma.done [#allocation11], 512
        $region68: #{tpu_custom_call.1} parent=51 // pred_fallthru
          _
        // Predicated region
        $region69: #{tpu_custom_call.1} parent=51 // pred_check
          %p417 = pneg %p159
        $region70: #{tpu_custom_call.1} parent=51 // pred_check_branch
          %419 = sbr.rel (%p417) target = $region72
        $region71: #{tpu_custom_call.1} parent=51 // pred_region
          %420 = dma.done [#allocation11], 512
        $region72: #{tpu_custom_call.1} parent=51 // pred_fallthru
          _
        // Predicated region
        $region73: #{tpu_custom_call.1} parent=51 // pred_check
          %p421 = pneg %p180
        $region74: #{tpu_custom_call.1} parent=51 // pred_check_branch
          %423 = sbr.rel (%p421) target = $region76
        $region75: #{tpu_custom_call.1} parent=51 // pred_region
          %424 = dma.done [#allocation14], 512
        $region76: #{tpu_custom_call.1} parent=51 // pred_fallthru
          _
        // Predicated region
        $region77: #{tpu_custom_call.1} parent=51 // pred_check
          %p425 = pneg %p201
        $region78: #{tpu_custom_call.1} parent=51 // pred_check_branch
          %427 = sbr.rel (%p425) target = $region80
        $region79: #{tpu_custom_call.1} parent=51 // pred_region
          %428 = dma.done [#allocation14], 512
        $region80: #{tpu_custom_call.1} parent=51 // pred_fallthru
          _
        %s429 = sand.u32 %s52, 1
        %s430 = scalar_lea.sflag [#allocation5], %s429
        %s431 = sand.u32 %s52, 1
        %s432 = smul.addr %s431, 8
        %s433 = scalar_lea.vmem [#allocation4], %s432
        %p434 = pneg %p65
        %p435 = pneg %p62
        %s436 = sand.u32 %s30, 1
        %s437 = scalar_lea.sflag [#allocation8], %s436
        %s438 = sand.u32 %s78, 1
        %s439 = smul.addr %s438, 8
        %s440 = scalar_lea.vmem [#allocation7], %s439
        %p441 = pneg %p91
        %p442 = pneg %p88
        %s443 = sand.u32 %s30, 1
        %s444 = scalar_lea.sflag [#allocation8], %s443
        %s445 = sand.u32 %s104, 1
        %s446 = smul.addr %s445, 8
        %s447 = scalar_lea.vmem [#allocation9], %s446
        %p448 = pneg %p117
        %p449 = pneg %p114
        %p450 = pneg %p138
        %p451 = pneg %p135
        %p452 = pneg %p159
        %p453 = pneg %p156
        %p454 = pneg %p180
        %p455 = pneg %p177
        %p456 = pneg %p201
        %p457 = pneg %p198
        %p458 = pneg %p222
        %p459 = pneg %p219
        %p460 = pneg %p250
        %p461 = pneg %p247
        %s462 = sand.u32 %s237, 1
        %s463 = scalar_lea.sflag [#allocation6], %s462
        %s464 = sand.u32 %s237, 1
        %s465 = smul.addr %s464, 8
        %s466 = scalar_lea.vmem [#allocation16], %s465
        %p467 = scmp.eq.s32.totalorder %s35, 0
        // Predicated region
        $region81: #{tpu_custom_call.1} parent=51 // pred_check
          %p468 = pneg %p467
        $region82: #{tpu_custom_call.1} parent=51 // pred_check_branch
          %470 = sbr.rel (%p468) target = $region84
        $region83: #{tpu_custom_call.1} parent=51 // pred_region
          %v471 = vld [vmem:[%s408] sm:$0xff]
          %v472 = vld [vmem:[#allocation12] sm:$0xff]
          %v473 = vld [vmem:[#allocation12 + $0x8] sm:$0xff]
          %v474 = vld [vmem:[#allocation12 + $0x10] sm:$0xff]
          %v475 = vld [vmem:[#allocation12 + $0x18] sm:$0xff]
          %vm476 = vcmask 261120
          %v478 = vsel %vm476, %v471, 0
          %480 = vmatprep.subr.mxu0 0.0
          %481 = vmatpush1.msra.mxu0 %v472
          %482 = vmatprep.subr.mxu0 0.0
          %483 = vmatpush1.msra.mxu0 %v473
          %484 = vmatprep.subr.mxu0 0.0
          %485 = vmatpush1.msra.mxu0 %v474
          %486 = vmatprep.subr.mxu0 0.0
          %487 = vmatpush1.msra.mxu0 %v475
          %488 = vmatprep.subr.mxu0 0.0
          %489 = vmatpush1.msra.mxu0 0.0
          %490 = vmatprep.subr.mxu0 0.0
          %491 = vmatpush1.msra.mxu0 0.0
          %492 = vmatprep.subr.mxu0 0.0
          %493 = vmatpush1.msra.mxu0 0.0
          %494 = vmatprep.subr.mxu0 0.0
          %495 = vmatpush1.msra.mxu0 0.0
          %496 = vmatprep.subr.mxu0 0.0
          %497 = vmatpush1.msra.mxu0 0.0
          %498 = vmatprep.subr.mxu0 0.0
          %499 = vmatpush1.msra.mxu0 0.0
          %500 = vmatprep.subr.mxu0 0.0
          %501 = vmatpush1.msra.mxu0 0.0
          %502 = vmatprep.subr.mxu0 0.0
          %503 = vmatpush1.msra.mxu0 0.0
          %504 = vmatprep.subr.mxu0 0.0
          %505 = vmatpush1.msra.mxu0 0.0
          %506 = vmatprep.subr.mxu0 0.0
          %507 = vmatpush1.msra.mxu0 0.0
          %508 = vmatprep.subr.mxu0 0.0
          %509 = vmatpush1.msra.mxu0 0.0
          %510 = vmatprep.subr.mxu0 0.0
          %511 = vmatpush1.msra.mxu0 0.0
          %512 = vmatprep.subr.mxu0 0.0
          %513 = vmatpush1.msra.mxu0 0.0
          %514 = vmatprep.subr.mxu0 0.0
          %515 = vmatpush1.msra.mxu0 0.0
          %516 = vmatprep.subr.mxu0 0.0
          %517 = vmatpush1.msra.mxu0 0.0
          %518 = vmatprep.subr.mxu0 0.0
          %519 = vmatpush1.msra.mxu0 0.0
          %520 = vmatprep.subr.mxu0 0.0
          %521 = vmatpush1.msra.mxu0 0.0
          %522 = vmatprep.subr.mxu0 0.0
          %523 = vmatpush1.msra.mxu0 0.0
          %524 = vmatprep.subr.mxu0 0.0
          %525 = vmatpush1.msra.mxu0 0.0
          %526 = vmatprep.subr.mxu0 0.0
          %527 = vmatpush1.msra.mxu0 0.0
          %528 = vmatprep.subr.mxu0 0.0
          %529 = vmatpush1.msra.mxu0 0.0
          %530 = vmatprep.subr.mxu0 0.0
          %531 = vmatpush1.msra.mxu0 0.0
          %532 = vmatprep.subr.mxu0 0.0
          %533 = vmatpush1.msra.mxu0 0.0
          %534 = vmatprep.subr.mxu0 0.0
          %535 = vmatpush1.msra.mxu0 0.0
          %536 = vmatprep.subr.mxu0 0.0
          %537 = vmatpush1.msra.mxu0 0.0
          %538 = vmatprep.subr.mxu0 0.0
          %539 = vmatpush1.msra.mxu0 0.0
          %540 = vmatprep.subr.mxu0 0.0
          %541 = vmatpush1.msra.mxu0 0.0
          %542 = vmatprep.subr.mxu0 0.0
          %543 = vmatpush1.msra.mxu0 0.0
          %544 = vmatprep.mubr.f32.mxu0 0.0
          %545 = vmatmul.mubr.f32.gmra.mrb[0].mxu0 %v478
          %v546 = vpop.f32.mrb[0].mxu0
          %v547 = vadd.f32 0.0, %v546
          %v548 = vpop.f32.mrb[0].mxu0
          %549 = vdwg.mxu0
          %550 = vst.msk [vmem:[#allocation2] sm:$0xff] %vm476, %v547
          %v551 = vld [vmem:[%s399] sm:$0xff]
          %v552 = vld [vmem:[#allocation13] sm:$0xff]
          %v553 = vld [vmem:[#allocation13 + $0x8] sm:$0xff]
          %v554 = vld [vmem:[#allocation13 + $0x10] sm:$0xff]
          %v555 = vld [vmem:[#allocation13 + $0x18] sm:$0xff]
          %v557 = vsel %vm476, %v551, 0
          %559 = vmatprep.subr.mxu0 0.0
          %560 = vmatpush1.msra.mxu0 %v552
          %561 = vmatprep.subr.mxu0 0.0
          %562 = vmatpush1.msra.mxu0 %v553
          %563 = vmatprep.subr.mxu0 0.0
          %564 = vmatpush1.msra.mxu0 %v554
          %565 = vmatprep.subr.mxu0 0.0
          %566 = vmatpush1.msra.mxu0 %v555
          %567 = vmatprep.subr.mxu0 0.0
          %568 = vmatpush1.msra.mxu0 0.0
          %569 = vmatprep.subr.mxu0 0.0
          %570 = vmatpush1.msra.mxu0 0.0
          %571 = vmatprep.subr.mxu0 0.0
          %572 = vmatpush1.msra.mxu0 0.0
          %573 = vmatprep.subr.mxu0 0.0
          %574 = vmatpush1.msra.mxu0 0.0
          %575 = vmatprep.subr.mxu0 0.0
          %576 = vmatpush1.msra.mxu0 0.0
          %577 = vmatprep.subr.mxu0 0.0
          %578 = vmatpush1.msra.mxu0 0.0
          %579 = vmatprep.subr.mxu0 0.0
          %580 = vmatpush1.msra.mxu0 0.0
          %581 = vmatprep.subr.mxu0 0.0
          %582 = vmatpush1.msra.mxu0 0.0
          %583 = vmatprep.subr.mxu0 0.0
          %584 = vmatpush1.msra.mxu0 0.0
          %585 = vmatprep.subr.mxu0 0.0
          %586 = vmatpush1.msra.mxu0 0.0
          %587 = vmatprep.subr.mxu0 0.0
          %588 = vmatpush1.msra.mxu0 0.0
          %589 = vmatprep.subr.mxu0 0.0
          %590 = vmatpush1.msra.mxu0 0.0
          %591 = vmatprep.subr.mxu0 0.0
          %592 = vmatpush1.msra.mxu0 0.0
          %593 = vmatprep.subr.mxu0 0.0
          %594 = vmatpush1.msra.mxu0 0.0
          %595 = vmatprep.subr.mxu0 0.0
          %596 = vmatpush1.msra.mxu0 0.0
          %597 = vmatprep.subr.mxu0 0.0
          %598 = vmatpush1.msra.mxu0 0.0
          %599 = vmatprep.subr.mxu0 0.0
          %600 = vmatpush1.msra.mxu0 0.0
          %601 = vmatprep.subr.mxu0 0.0
          %602 = vmatpush1.msra.mxu0 0.0
          %603 = vmatprep.subr.mxu0 0.0
          %604 = vmatpush1.msra.mxu0 0.0
          %605 = vmatprep.subr.mxu0 0.0
          %606 = vmatpush1.msra.mxu0 0.0
          %607 = vmatprep.subr.mxu0 0.0
          %608 = vmatpush1.msra.mxu0 0.0
          %609 = vmatprep.subr.mxu0 0.0
          %610 = vmatpush1.msra.mxu0 0.0
          %611 = vmatprep.subr.mxu0 0.0
          %612 = vmatpush1.msra.mxu0 0.0
          %613 = vmatprep.subr.mxu0 0.0
          %614 = vmatpush1.msra.mxu0 0.0
          %615 = vmatprep.subr.mxu0 0.0
          %616 = vmatpush1.msra.mxu0 0.0
          %617 = vmatprep.subr.mxu0 0.0
          %618 = vmatpush1.msra.mxu0 0.0
          %619 = vmatprep.subr.mxu0 0.0
          %620 = vmatpush1.msra.mxu0 0.0
          %621 = vmatprep.subr.mxu0 0.0
          %622 = vmatpush1.msra.mxu0 0.0
          %623 = vmatprep.mubr.f32.mxu0 0.0
          %624 = vmatmul.mubr.f32.gmra.mrb[0].mxu0 %v557
          %v625 = vpop.f32.mrb[0].mxu0
          %v626 = vadd.f32 0.0, %v625
          %v627 = vpop.f32.mrb[0].mxu0
          %628 = vdwg.mxu0
          %629 = vst.msk [vmem:[#allocation3] sm:$0xff] %vm476, %v626
        $region84: #{tpu_custom_call.1} parent=51 // pred_fallthru
          _
        %v630 = vld [vmem:[%s390] sm:$0xff]
        %v631 = vld [vmem:[#allocation10] sm:$0xff]
        %v632 = vld [vmem:[#allocation10 + $0x8] sm:$0xff]
        %v633 = vld [vmem:[#allocation10 + $0x10] sm:$0xff]
        %v634 = vld [vmem:[#allocation10 + $0x18] sm:$0xff]
        %vm635 = vcmask 261120
        %v637 = vsel %vm635, %v630, 0
        %639 = vmatprep.subr.mxu0 0.0
        %640 = vmatpush1.msra.mxu0 %v631
        %641 = vmatprep.subr.mxu0 0.0
        %642 = vmatpush1.msra.mxu0 %v632
        %643 = vmatprep.subr.mxu0 0.0
        %644 = vmatpush1.msra.mxu0 %v633
        %645 = vmatprep.subr.mxu0 0.0
        %646 = vmatpush1.msra.mxu0 %v634
        %647 = vmatprep.subr.mxu0 0.0
        %648 = vmatpush1.msra.mxu0 0.0
        %649 = vmatprep.subr.mxu0 0.0
        %650 = vmatpush1.msra.mxu0 0.0
        %651 = vmatprep.subr.mxu0 0.0
        %652 = vmatpush1.msra.mxu0 0.0
        %653 = vmatprep.subr.mxu0 0.0
        %654 = vmatpush1.msra.mxu0 0.0
        %655 = vmatprep.subr.mxu0 0.0
        %656 = vmatpush1.msra.mxu0 0.0
        %657 = vmatprep.subr.mxu0 0.0
        %658 = vmatpush1.msra.mxu0 0.0
        %659 = vmatprep.subr.mxu0 0.0
        %660 = vmatpush1.msra.mxu0 0.0
        %661 = vmatprep.subr.mxu0 0.0
        %662 = vmatpush1.msra.mxu0 0.0
        %663 = vmatprep.subr.mxu0 0.0
        %664 = vmatpush1.msra.mxu0 0.0
        %665 = vmatprep.subr.mxu0 0.0
        %666 = vmatpush1.msra.mxu0 0.0
        %667 = vmatprep.subr.mxu0 0.0
        %668 = vmatpush1.msra.mxu0 0.0
        %669 = vmatprep.subr.mxu0 0.0
        %670 = vmatpush1.msra.mxu0 0.0
        %671 = vmatprep.subr.mxu0 0.0
        %672 = vmatpush1.msra.mxu0 0.0
        %673 = vmatprep.subr.mxu0 0.0
        %674 = vmatpush1.msra.mxu0 0.0
        %675 = vmatprep.subr.mxu0 0.0
        %676 = vmatpush1.msra.mxu0 0.0
        %677 = vmatprep.subr.mxu0 0.0
        %678 = vmatpush1.msra.mxu0 0.0
        %679 = vmatprep.subr.mxu0 0.0
        %680 = vmatpush1.msra.mxu0 0.0
        %681 = vmatprep.subr.mxu0 0.0
        %682 = vmatpush1.msra.mxu0 0.0
        %683 = vmatprep.subr.mxu0 0.0
        %684 = vmatpush1.msra.mxu0 0.0
        %685 = vmatprep.subr.mxu0 0.0
        %686 = vmatpush1.msra.mxu0 0.0
        %687 = vmatprep.subr.mxu0 0.0
        %688 = vmatpush1.msra.mxu0 0.0
        %689 = vmatprep.subr.mxu0 0.0
        %690 = vmatpush1.msra.mxu0 0.0
        %691 = vmatprep.subr.mxu0 0.0
        %692 = vmatpush1.msra.mxu0 0.0
        %693 = vmatprep.subr.mxu0 0.0
        %694 = vmatpush1.msra.mxu0 0.0
        %695 = vmatprep.subr.mxu0 0.0
        %696 = vmatpush1.msra.mxu0 0.0
        %697 = vmatprep.subr.mxu0 0.0
        %698 = vmatpush1.msra.mxu0 0.0
        %699 = vmatprep.subr.mxu0 0.0
        %700 = vmatpush1.msra.mxu0 0.0
        %701 = vmatprep.subr.mxu0 0.0
        %702 = vmatpush1.msra.mxu0 0.0
        %703 = vmatprep.mubr.f32.mxu0 0.0
        %704 = vmatmul.mubr.f32.gmra.mrb[0].mxu0 %v637
        %v705 = vpop.f32.mrb[0].mxu0
        %v706 = vadd.f32 0.0, %v705
        %v707 = vpop.f32.mrb[0].mxu0
        %708 = vdwg.mxu0
        %v709 = vld [vmem:[#allocation2] sm:$0xff]
        %v711 = vsel %vm635, %v706, 0
        %v714 = vsel %vm635, %v709, 0
        %716 = vmatprep.subr.mxu0 0.0
        %717 = vmatpush1.xpose.msra.mxu0 %v714
        %718 = vmatprep.subr.mxu0 0.0
        %719 = vmatpush1.xpose.msra.mxu0 0.0
        %720 = vmatprep.subr.mxu0 0.0
        %721 = vmatpush1.xpose.msra.mxu0 0.0
        %722 = vmatprep.subr.mxu0 0.0
        %723 = vmatpush1.xpose.msra.mxu0 0.0
        %724 = vmatprep.subr.mxu0 0.0
        %725 = vmatpush1.xpose.msra.mxu0 0.0
        %726 = vmatprep.subr.mxu0 0.0
        %727 = vmatpush1.xpose.msra.mxu0 0.0
        %728 = vmatprep.subr.mxu0 0.0
        %729 = vmatpush1.xpose.msra.mxu0 0.0
        %730 = vmatprep.subr.mxu0 0.0
        %731 = vmatpush1.xpose.msra.mxu0 0.0
        %732 = vmatprep.subr.mxu0 0.0
        %733 = vmatpush1.xpose.msra.mxu0 0.0
        %734 = vmatprep.subr.mxu0 0.0
        %735 = vmatpush1.xpose.msra.mxu0 0.0
        %736 = vmatprep.subr.mxu0 0.0
        %737 = vmatpush1.xpose.msra.mxu0 0.0
        %738 = vmatprep.subr.mxu0 0.0
        %739 = vmatpush1.xpose.msra.mxu0 0.0
        %740 = vmatprep.subr.mxu0 0.0
        %741 = vmatpush1.xpose.msra.mxu0 0.0
        %742 = vmatprep.subr.mxu0 0.0
        %743 = vmatpush1.xpose.msra.mxu0 0.0
        %744 = vmatprep.subr.mxu0 0.0
        %745 = vmatpush1.xpose.msra.mxu0 0.0
        %746 = vmatprep.subr.mxu0 0.0
        %747 = vmatpush1.xpose.msra.mxu0 0.0
        %748 = vmatprep.subr.mxu0 0.0
        %749 = vmatpush1.xpose.msra.mxu0 0.0
        %750 = vmatprep.subr.mxu0 0.0
        %751 = vmatpush1.xpose.msra.mxu0 0.0
        %752 = vmatprep.subr.mxu0 0.0
        %753 = vmatpush1.xpose.msra.mxu0 0.0
        %754 = vmatprep.subr.mxu0 0.0
        %755 = vmatpush1.xpose.msra.mxu0 0.0
        %756 = vmatprep.subr.mxu0 0.0
        %757 = vmatpush1.xpose.msra.mxu0 0.0
        %758 = vmatprep.subr.mxu0 0.0
        %759 = vmatpush1.xpose.msra.mxu0 0.0
        %760 = vmatprep.subr.mxu0 0.0
        %761 = vmatpush1.xpose.msra.mxu0 0.0
        %762 = vmatprep.subr.mxu0 0.0
        %763 = vmatpush1.xpose.msra.mxu0 0.0
        %764 = vmatprep.subr.mxu0 0.0
        %765 = vmatpush1.xpose.msra.mxu0 0.0
        %766 = vmatprep.subr.mxu0 0.0
        %767 = vmatpush1.xpose.msra.mxu0 0.0
        %768 = vmatprep.subr.mxu0 0.0
        %769 = vmatpush1.xpose.msra.mxu0 0.0
        %770 = vmatprep.subr.mxu0 0.0
        %771 = vmatpush1.xpose.msra.mxu0 0.0
        %772 = vmatprep.subr.mxu0 0.0
        %773 = vmatpush1.xpose.msra.mxu0 0.0
        %774 = vmatprep.subr.mxu0 0.0
        %775 = vmatpush1.xpose.msra.mxu0 0.0
        %776 = vmatprep.subr.mxu0 0.0
        %777 = vmatpush1.xpose.msra.mxu0 0.0
        %778 = vmatprep.subr.mxu0 0.0
        %779 = vmatpush1.xpose.msra.mxu0 0.0
        %780 = vmatprep.mubr.f32.mxu0 0.0
        %781 = vmatmul.mubr.f32.gmra.mrb[0].mxu0 %v711
        %v782 = vpop.f32.mrb[0].mxu0
        %v783 = vadd.f32 0.0, %v782
        %v784 = vpop.f32.mrb[0].mxu0
        %785 = vdwg.mxu0
        %vm786 = vcmask 64512
        %v787 = vsel %vm786, %v783, -inf
        %788 = vmax.xlane.f32.xlu0 %v787
        %v789 = vpop.xlane.xlu0 %788
        %v790 = vsub.f32 %v783, %v789
        %v791 = vmul.f32 %v790, 1.442695
        %v792 = vpow.pop %v791
        %v793 = vsel %vm786, %v792, 0.0
        %794 = vadd.xlane.f32.xlu0 %v793
        %v795 = vpop.xlane.xlu0 %794
        %v796 = vmul.f32 %v795, 0.6
        %vm797 = vcmp.lt.f32.partialorder %v792, %v796
        %v798 = vsel %vm797, 0.0, %v792
        %v799 = vrcp.pop %v795
        %v800 = vmul.f32 %v798, %v799
        %v801 = vld [vmem:[#allocation3] sm:$0xff]
        %v803 = vsel %vm786, %v800, 0
        %805 = vmatprep.subr.mxu0 0.0
        %806 = vmatpush1.msra.mxu0 %v801
        %807 = vmatprep.subr.mxu0 0.0
        %808 = vmatpush1.msra.mxu0 0.0
        %809 = vmatprep.subr.mxu0 0.0
        %810 = vmatpush1.msra.mxu0 0.0
        %811 = vmatprep.subr.mxu0 0.0
        %812 = vmatpush1.msra.mxu0 0.0
        %813 = vmatprep.subr.mxu0 0.0
        %814 = vmatpush1.msra.mxu0 0.0
        %815 = vmatprep.subr.mxu0 0.0
        %816 = vmatpush1.msra.mxu0 0.0
        %817 = vmatprep.subr.mxu0 0.0
        %818 = vmatpush1.msra.mxu0 0.0
        %819 = vmatprep.subr.mxu0 0.0
        %820 = vmatpush1.msra.mxu0 0.0
        %821 = vmatprep.subr.mxu0 0.0
        %822 = vmatpush1.msra.mxu0 0.0
        %823 = vmatprep.subr.mxu0 0.0
        %824 = vmatpush1.msra.mxu0 0.0
        %825 = vmatprep.subr.mxu0 0.0
        %826 = vmatpush1.msra.mxu0 0.0
        %827 = vmatprep.subr.mxu0 0.0
        %828 = vmatpush1.msra.mxu0 0.0
        %829 = vmatprep.subr.mxu0 0.0
        %830 = vmatpush1.msra.mxu0 0.0
        %831 = vmatprep.subr.mxu0 0.0
        %832 = vmatpush1.msra.mxu0 0.0
        %833 = vmatprep.subr.mxu0 0.0
        %834 = vmatpush1.msra.mxu0 0.0
        %835 = vmatprep.subr.mxu0 0.0
        %836 = vmatpush1.msra.mxu0 0.0
        %837 = vmatprep.subr.mxu0 0.0
        %838 = vmatpush1.msra.mxu0 0.0
        %839 = vmatprep.subr.mxu0 0.0
        %840 = vmatpush1.msra.mxu0 0.0
        %841 = vmatprep.subr.mxu0 0.0
        %842 = vmatpush1.msra.mxu0 0.0
        %843 = vmatprep.subr.mxu0 0.0
        %844 = vmatpush1.msra.mxu0 0.0
        %845 = vmatprep.subr.mxu0 0.0
        %846 = vmatpush1.msra.mxu0 0.0
        %847 = vmatprep.subr.mxu0 0.0
        %848 = vmatpush1.msra.mxu0 0.0
        %849 = vmatprep.subr.mxu0 0.0
        %850 = vmatpush1.msra.mxu0 0.0
        %851 = vmatprep.subr.mxu0 0.0
        %852 = vmatpush1.msra.mxu0 0.0
        %853 = vmatprep.subr.mxu0 0.0
        %854 = vmatpush1.msra.mxu0 0.0
        %855 = vmatprep.subr.mxu0 0.0
        %856 = vmatpush1.msra.mxu0 0.0
        %857 = vmatprep.subr.mxu0 0.0
        %858 = vmatpush1.msra.mxu0 0.0
        %859 = vmatprep.subr.mxu0 0.0
        %860 = vmatpush1.msra.mxu0 0.0
        %861 = vmatprep.subr.mxu0 0.0
        %862 = vmatpush1.msra.mxu0 0.0
        %863 = vmatprep.subr.mxu0 0.0
        %864 = vmatpush1.msra.mxu0 0.0
        %865 = vmatprep.subr.mxu0 0.0
        %866 = vmatpush1.msra.mxu0 0.0
        %867 = vmatprep.subr.mxu0 0.0
        %868 = vmatpush1.msra.mxu0 0.0
        %869 = vmatprep.mubr.f32.mxu0 0.0
        %870 = vmatmul.mubr.f32.gmra.mrb[0].mxu0 %v803
        %v871 = vpop.f32.mrb[0].mxu0
        %v872 = vadd.f32 0.0, %v871
        %v873 = vpop.f32.mrb[0].mxu0
        %874 = vdwg.mxu0
        %v875 = vld [vmem:[#allocation15] sm:$0xff]
        %v876 = vld [vmem:[#allocation15 + $0x8] sm:$0xff]
        %v877 = vld [vmem:[#allocation15 + $0x10] sm:$0xff]
        %v878 = vld [vmem:[#allocation15 + $0x18] sm:$0xff]
        %v879 = vld [vmem:[%s7] sm:$0x1]
        %v881 = vlaneseq
        %v882 = vshrl.u32 %v881, 7
        %v883 = vsub.s32 0, %v882
        %v884 = vrot.slane %v879, %v883
        %v887 = vsel %vm635, %v872, 0
        %889 = vmatprep.subr.mxu0 0.0
        %890 = vmatpush1.msra.mxu0 %v875
        %891 = vmatprep.subr.mxu0 0.0
        %892 = vmatpush1.msra.mxu0 %v876
        %893 = vmatprep.subr.mxu0 0.0
        %894 = vmatpush1.msra.mxu0 %v877
        %895 = vmatprep.subr.mxu0 0.0
        %896 = vmatpush1.msra.mxu0 %v878
        %897 = vmatprep.subr.mxu0 0.0
        %898 = vmatpush1.msra.mxu0 0.0
        %899 = vmatprep.subr.mxu0 0.0
        %900 = vmatpush1.msra.mxu0 0.0
        %901 = vmatprep.subr.mxu0 0.0
        %902 = vmatpush1.msra.mxu0 0.0
        %903 = vmatprep.subr.mxu0 0.0
        %904 = vmatpush1.msra.mxu0 0.0
        %905 = vmatprep.subr.mxu0 0.0
        %906 = vmatpush1.msra.mxu0 0.0
        %907 = vmatprep.subr.mxu0 0.0
        %908 = vmatpush1.msra.mxu0 0.0
        %909 = vmatprep.subr.mxu0 0.0
        %910 = vmatpush1.msra.mxu0 0.0
        %911 = vmatprep.subr.mxu0 0.0
        %912 = vmatpush1.msra.mxu0 0.0
        %913 = vmatprep.subr.mxu0 0.0
        %914 = vmatpush1.msra.mxu0 0.0
        %915 = vmatprep.subr.mxu0 0.0
        %916 = vmatpush1.msra.mxu0 0.0
        %917 = vmatprep.subr.mxu0 0.0
        %918 = vmatpush1.msra.mxu0 0.0
        %919 = vmatprep.subr.mxu0 0.0
        %920 = vmatpush1.msra.mxu0 0.0
        %921 = vmatprep.subr.mxu0 0.0
        %922 = vmatpush1.msra.mxu0 0.0
        %923 = vmatprep.subr.mxu0 0.0
        %924 = vmatpush1.msra.mxu0 0.0
        %925 = vmatprep.subr.mxu0 0.0
        %926 = vmatpush1.msra.mxu0 0.0
        %927 = vmatprep.subr.mxu0 0.0
        %928 = vmatpush1.msra.mxu0 0.0
        %929 = vmatprep.subr.mxu0 0.0
        %930 = vmatpush1.msra.mxu0 0.0
        %931 = vmatprep.subr.mxu0 0.0
        %932 = vmatpush1.msra.mxu0 0.0
        %933 = vmatprep.subr.mxu0 0.0
        %934 = vmatpush1.msra.mxu0 0.0
        %935 = vmatprep.subr.mxu0 0.0
        %936 = vmatpush1.msra.mxu0 0.0
        %937 = vmatprep.subr.mxu0 0.0
        %938 = vmatpush1.msra.mxu0 0.0
        %939 = vmatprep.subr.mxu0 0.0
        %940 = vmatpush1.msra.mxu0 0.0
        %941 = vmatprep.subr.mxu0 0.0
        %942 = vmatpush1.msra.mxu0 0.0
        %943 = vmatprep.subr.mxu0 0.0
        %944 = vmatpush1.msra.mxu0 0.0
        %945 = vmatprep.subr.mxu0 0.0
        %946 = vmatpush1.msra.mxu0 0.0
        %947 = vmatprep.subr.mxu0 0.0
        %948 = vmatpush1.msra.mxu0 0.0
        %949 = vmatprep.subr.mxu0 0.0
        %950 = vmatpush1.msra.mxu0 0.0
        %951 = vmatprep.subr.mxu0 0.0
        %952 = vmatpush1.msra.mxu0 0.0
        %953 = vmatprep.mubr.f32.mxu0 0.0
        %954 = vmatmul.mubr.f32.gmra.mrb[0].mxu0 %v887
        %v955 = vpop.f32.mrb[0].mxu0
        %v956 = vadd.f32 %v884, %v955
        %v957 = vpop.f32.mrb[0].mxu0
        %958 = vdwg.mxu0
        %959 = vst.msk [vmem:[%s466] sm:$0xff] %vm635, %v956
        %s960 = sand.u32 %s237, 1
        %s961 = scalar_lea.sflag [#allocation6], %s960
        %s962 = sand.u32 %s237, 1
        %s963 = smul.addr %s962, 8
        %s964 = scalar_lea.vmem [#allocation16], %s963
        // Predicated region
        $region85: #{tpu_custom_call.1} parent=51 // pred_check
          %p965 = pneg %p247
        $region86: #{tpu_custom_call.1} parent=51 // pred_check_branch
          %967 = sbr.rel (%p965) target = $region88
        $region87: #{tpu_custom_call.1} parent=51 // pred_region
          %s969 = ssub.s32 128, 128
          %970 = vsyncadd %s961, %s969
          %s971 = sadd.s32 %s35, %s34
          %s972 = smul.addr %s971, 128
          %s973 = scalar_lea.hbm %s8, %s972
          %s975 = sshll.u32 %s964, 4
          %s976 = int_to_ptr.vmem [resolvable:$true] %s975
          %978 = dma.vmem_to_hbm [thread:$0]  %s976, 128, %s973, %s961
        $region88: #{tpu_custom_call.1} parent=51 // pred_fallthru
          _
      $region52: #{tpu_custom_call.1} parent=5 // pred_fallthru
        _
      %p979 = scmp.le.s32.totalorder 2, %s25
      // Predicated region
      $region89: #{tpu_custom_call.1} parent=5 // pred_check
        %p980 = pneg %p979
      $region90: #{tpu_custom_call.1} parent=5 // pred_check_branch
        %982 = sbr.rel (%p980) target = $region92
      $region91: #{tpu_custom_call.1} parent=5 // pred_region
        %s983 = ssub.s32 %s25, 2
        // Predicated region
        $region93: #{tpu_custom_call.1} parent=91 // pred_check
          %p984 = pneg %p253
        $region94: #{tpu_custom_call.1} parent=91 // pred_check_branch
          %986 = sbr.rel (%p984) target = $region96
        $region95: #{tpu_custom_call.1} parent=91 // pred_region
          %s987 = sand.u32 %s238, 1
          %s988 = scalar_lea.sflag [#allocation6], %s987
          %s989 = sand.u32 %s238, 1
          %s990 = smul.addr %s989, 8
          %s991 = scalar_lea.vmem [#allocation16], %s990
          %992 = dma.done %s988, 128
        $region96: #{tpu_custom_call.1} parent=91 // pred_fallthru
          _
      $region92: #{tpu_custom_call.1} parent=5 // pred_fallthru
        _
    $region6: #{tpu_custom_call.1} parent=1 // loop_footer
      %s29 = sadd.s32 1, %s25
    $region7: #{tpu_custom_call.1} parent=1 // loop_footer_branch
      %24 = sbr.rel target = $region3
    $region8: #{tpu_custom_call.1} parent=1 // loop_exit
      _
    %993 = vsyncpa [#allocation5], 1
    %s994 = scalar_lea.sflag [#allocation5], 1
    %995 = vsyncpa %s994, 1
    %996 = vsyncpa [#allocation8], 1
    %s997 = scalar_lea.sflag [#allocation8], 1
    %998 = vsyncpa %s997, 1
    %999 = vsyncpa [#allocation11], 1
    %1000 = vsyncpa [#allocation14], 1
    %1001 = vsyncpa [#allocation6], 1
    %s1002 = scalar_lea.sflag [#allocation6], 1
    %1003 = vsyncpa %s1002, 1

</llo_original>
